<compile_context>
chip_gen: v6e
topology: v6e:2x2x1
jax: 0.10.0
libtpu: 0.0.40
codegen_flags: <defaults>
</compile_context>

<pallas_src>
import jax
import jax.numpy as jnp
from jax.experimental import pallas as pl
from jax.experimental.pallas import tpu as pltpu

EPS_1E10 = 1e-10
_MAX_RAY_TILE = 1024


# ------------------------------ helpers -------------------------------------


def _round_up(x, m):
    return ((x + m - 1) // m) * m


def _vmem_capacity_bytes():
    try:
        return int(pltpu.get_tpu_info().vmem_capacity_bytes)
    except Exception:  # fallback (e.g. interpret mode)
        return 128 << 20


def _auto_ray_tile(R, S):
    """Pick the ray tile from the chip's VMEM: 3 f32 inputs, double-buffered."""
    vmem = _vmem_capacity_bytes()
    budget = vmem // 4                      # generous headroom for outputs etc.
    per_row = 3 * 2 * S * 4                 # 3 inputs x 2 pipeline buffers x f32
    tile = max(8, min(_MAX_RAY_TILE, budget // per_row))
    tile = (tile // 8) * 8
    tile = min(tile, _round_up(R, 8))       # never bigger than the (padded) work
    return max(8, tile)


def _compiler_params(tile, S, median):
    vmem = _vmem_capacity_bytes()
    need = 3 * 2 * tile * S * 4             # double-buffered ray-tile inputs
    if median:
        need += 2 * S * S * 4               # resident triangular matrix
    need += 2 * tile * 4 + 4 * 128 * 4 + (2 << 20)   # outputs + slack
    limit = int(min(vmem, max(32 << 20, need)))
    return pltpu.CompilerParams(
        dimension_semantics=("parallel",),  # independent ray tiles -> megacore
        vmem_limit_bytes=limit,
    )


# ------------------------- Pallas kernels ----------------------------------


def _expected_depth_kernel(w_ref, s_ref, e_ref, d_ref, mn_ref, mx_ref):
    """method == 'expected'.

    w_ref/s_ref/e_ref : VMEM (TR, S) f32
    d_ref             : VMEM (1, 1, TR)  unclipped expected depth (lane-dense)
    mn_ref/mx_ref     : VMEM (1, 1, 128) per-tile steps min / max (broadcast)
    The global clip is finished in a tiny wrapper epilogue.
    """
    w = w_ref[...]
    steps = (s_ref[...] + e_ref[...]) * 0.5
    num = jnp.sum(w * steps, axis=-1, keepdims=True)            # (TR, 1)
    den = jnp.sum(w, axis=-1, keepdims=True) + EPS_1E10         # (TR, 1)
    depth = num / den                                           # (TR, 1)
    # lane-dense store: (TR, 1) -> (1, TR) on the XLU, then add leading axis
    d_ref[...] = jnp.transpose(depth).reshape(1, 1, -1).astype(d_ref.dtype)

    tmin = jnp.min(jnp.min(steps, axis=-1, keepdims=True), axis=0, keepdims=True)
    tmax = jnp.max(jnp.max(steps, axis=-1, keepdims=True), axis=0, keepdims=True)
    mn_ref[...] = jnp.broadcast_to(tmin, mn_ref.shape).astype(mn_ref.dtype)
    mx_ref[...] = jnp.broadcast_to(tmax, mx_ref.shape).astype(mx_ref.dtype)


def _median_depth_kernel(tri_ref, w_ref, s_ref, e_ref, d_ref):
    """method == 'median'.

    tri_ref : VMEM (S, S) f32 upper-triangular matrix (constant, resident)
    cumsum is an MXU matmul; searchsorted(cumw, 0.5, side='left') is a
    count of (cumw < 0.5); gather(steps, idx) is a one-hot masked reduction.
    """
    w = w_ref[...].astype(jnp.float32)
    steps = (s_ref[...] + e_ref[...]) * 0.5
    tr, S = w.shape

    cumw = jnp.dot(w, tri_ref[...], preferred_element_type=jnp.float32)  # (TR, S)

    median_index = jnp.sum((cumw < 0.5).astype(jnp.int32), axis=-1,
                           keepdims=True)                                # (TR, 1)
    median_index = jnp.clip(median_index, 0, S - 1)

    lane = jax.lax.broadcasted_iota(jnp.int32, (tr, S), 1)
    onehot = (lane == median_index).astype(steps.dtype)
    depth = jnp.sum(steps * onehot, axis=-1, keepdims=True)              # (TR, 1)
    d_ref[...] = jnp.transpose(depth).reshape(1, 1, -1).astype(d_ref.dtype)


# ------------------------------ wrapper -------------------------------------


def depth_renderer_forward(weights, starts, ends, *, method="expected",
                           normalize=False, nears=None, fars=None,
                           ray_indices=None, num_rays=None, ray_tile=None):
    """JAX/Pallas equivalent of DepthRenderer.forward (un-packed samples).

    weights : (R, S, 1) float32
    starts  : (R, S)    float32  (ray_samples.euclidean_starts)
    ends    : (R, S)    float32  (ray_samples.euclidean_ends)
    returns : (R, 1)    float32
    """
    if ray_indices is not None and num_rays is not None:
        raise NotImplementedError("Packed samples are not supported.")

    R, S, _ = weights.shape
    w2 = weights[..., 0]                                        # (R, S) glue reshape

    tile = _auto_ray_tile(R, S) if ray_tile is None else int(ray_tile)
    assert tile % 8 == 0 and tile >= 8, tile
    num_tiles = pl.cdiv(R, tile)
    R_pad = num_tiles * tile
    if R_pad != R:
        # Edge-pad: duplicated rays give valid (discarded) depths and do not
        # perturb the global steps min/max used by the 'expected' clip.
        pad = ((0, R_pad - R), (0, 0))
        w2 = jnp.pad(w2, pad, mode="edge")
        starts_p = jnp.pad(starts, pad, mode="edge")
        ends_p = jnp.pad(ends, pad, mode="edge")
    else:
        starts_p, ends_p = starts, ends

    cparams = _compiler_params(tile, S, method == "median")
    grid = (num_tiles,)
    in_spec = pl.BlockSpec((tile, S), lambda i: (i, 0))
    d_shape = jax.ShapeDtypeStruct((num_tiles, 1, tile), jnp.float32)
    d_spec = pl.BlockSpec((1, 1, tile), lambda i: (i, 0, 0))

    if method == "expected":
        mm_shape = jax.ShapeDtypeStruct((num_tiles, 1, 128), jnp.float32)
        mm_spec = pl.BlockSpec((1, 1, 128), lambda i: (i, 0, 0))
        d_rows, mn, mx = pl.pallas_call(
            _expected_depth_kernel,
            out_shape=(d_shape, mm_shape, mm_shape),
            grid=grid,
            in_specs=[in_spec, in_spec, in_spec],
            out_specs=(d_spec, mm_spec, mm_spec),
            compiler_params=cparams,
        )(w2, starts_p, ends_p)
        depth = d_rows.reshape(R_pad, 1)[:R]
        # Tiny epilogue: finish the global min/max reduction and clip.
        depth = jnp.clip(depth, jnp.min(mn), jnp.max(mx))

    elif method == "median":
        # S x S upper triangular (T[k, j] = 1 iff k <= j), built once and kept
        # resident in VMEM across all grid steps via a constant index_map.
        tri = (jnp.arange(S)[:, None] <= jnp.arange(S)[None, :]).astype(jnp.float32)
        tri_spec = pl.BlockSpec((S, S), lambda i: (0, 0))
        d_rows = pl.pallas_call(
            _median_depth_kernel,
            out_shape=d_shape,
            grid=grid,
            in_specs=[tri_spec, in_spec, in_spec, in_spec],
            out_specs=d_spec,
            compiler_params=cparams,
        )(tri, w2, starts_p, ends_p)
        depth = d_rows.reshape(R_pad, 1)[:R]
    else:
        raise NotImplementedError(f"Method {method} not implemented")

    if normalize:
        # nears/fars default to global min/max of the *output*, so this stage
        # is a tiny (R, 1) elementwise epilogue kept in JAX glue.
        if nears is None:
            nears = jnp.min(depth)
        if fars is None:
            fars = jnp.max(depth)
        depth = 1.0 - (depth - nears) / (fars - nears + EPS_1E10)
        # PyTorch clamps (with a warning) only when out of range; clamping is
        # a no-op otherwise, so unconditional clip is semantically identical.
        depth = jnp.clip(depth, 0.0, 1.0)
    return depth


# --------------------------- pure-JAX reference ------------------------------


def _ref_forward(weights, starts, ends, method, normalize, nears=None, fars=None):
    steps = ((starts + ends) / 2.0)[..., None]                  # (R, S, 1)
    if method == "median":
        cumw = jnp.cumsum(weights[..., 0], axis=-1)
        median_index = jnp.sum((cumw < 0.5).astype(jnp.int32), axis=-1, keepdims=True)
        median_index = jnp.clip(median_index, 0, steps.shape[-2] - 1)
        depth = jnp.take_along_axis(steps[..., 0], median_index, axis=-1)
    else:
        depth = jnp.sum(weights * steps, axis=-2) / (jnp.sum(weights, -2) + EPS_1E10)
        depth = jnp.clip(depth, steps.min(), steps.max())
    if normalize:
        if nears is None:
            nears = jnp.min(depth)
        if fars is None:
            fars = jnp.max(depth)
        depth = 1.0 - (depth - nears) / (fars - nears + EPS_1E10)
        depth = jnp.clip(depth, 0.0, 1.0)
    return depth


if __name__ == "__main__":
    key = jax.random.PRNGKey(0)
    R, S = 64, 128                                               # rays, samples/ray
    k1, k2 = jax.random.split(key)

    raw = jax.random.uniform(k1, (R, S, 1), jnp.float32)
    weights = raw / jnp.sum(raw, axis=-2, keepdims=True)         # >=0, sums to 1
    starts = jnp.sort(jax.random.uniform(k2, (R, S), jnp.float32,
                                         minval=0.5, maxval=6.0), axis=-1)
    ends = starts + 0.05

    # Both methods at the default (auto) ray tile.
    for method in ("expected", "median"):
        out = depth_renderer_forward(weights, starts, ends,
                                     method=method, normalize=True)
        out = jax.block_until_ready(out)
        ref = _ref_forward(weights, starts, ends, method, True)
        assert out.shape == (R, 1), out.shape
        assert jnp.allclose(out, ref, atol=1e-5, rtol=1e-5), (
            method, float(jnp.max(jnp.abs(out - ref))))

    # Median with an explicit small ray_tile: exercises a multi-step grid and
    # the resident triangular matrix.
    out = depth_renderer_forward(weights, starts, ends, method="median",
                                 normalize=False, ray_tile=32)
    out = jax.block_until_ready(out)
    ref = _ref_forward(weights, starts, ends, "median", False)
    assert jnp.allclose(out, ref, atol=1e-5, rtol=1e-5), (
        "median-tiled", float(jnp.max(jnp.abs(out - ref))))

    # Expected at R not a multiple of 8: exercises the ray-padding path.
    R2 = 100
    k3, k4 = jax.random.split(k2)
    raw2 = jax.random.uniform(k3, (R2, S, 1), jnp.float32)
    weights2 = raw2 / jnp.sum(raw2, axis=-2, keepdims=True)
    starts2 = jnp.sort(jax.random.uniform(k4, (R2, S), jnp.float32,
                                          minval=0.5, maxval=6.0), axis=-1)
    ends2 = starts2 + 0.05
    out2 = depth_renderer_forward(weights2, starts2, ends2,
                                  method="expected", normalize=True)
    out2 = jax.block_until_ready(out2)
    ref2 = _ref_forward(weights2, starts2, ends2, "expected", True)
    assert out2.shape == (R2, 1), out2.shape
    assert jnp.allclose(out2, ref2, atol=1e-5, rtol=1e-5), (
        "expected-padded", float(jnp.max(jnp.abs(out2 - ref2))))

    print("KERNEL_OK")
</pallas_src>

<mosaic_0001>
module attributes {stable_mosaic.version = 11 : i64} {
  func.func @_expected_depth_kernel(%arg0: i32, %arg1: memref<64x128xf32, #tpu.memory_space<vmem>>, %arg2: memref<64x128xf32, #tpu.memory_space<vmem>>, %arg3: memref<64x128xf32, #tpu.memory_space<vmem>>, %arg4: memref<1x1x64xf32, #tpu.memory_space<vmem>>, %arg5: memref<1x1x128xf32, #tpu.memory_space<vmem>>, %arg6: memref<1x1x128xf32, #tpu.memory_space<vmem>>) attributes {dimension_semantics = [#tpu.dimension_semantics<parallel>], iteration_bounds = array<i64: 1>, scalar_prefetch = 0 : i64, scratch_operands = 0 : i64, tpu.core_type = #tpu.core_type<tc>, window_params = [{transform_indices = @transform_0, window_bounds = array<i64: 64, 128>}, {transform_indices = @transform_1, window_bounds = array<i64: 64, 128>}, {transform_indices = @transform_2, window_bounds = array<i64: 64, 128>}, {transform_indices = @transform_3, window_bounds = array<i64: 1, 1, 64>}, {transform_indices = @transform_4, window_bounds = array<i64: 1, 1, 128>}, {transform_indices = @transform_5, window_bounds = array<i64: 1, 1, 128>}]} {
    %c0 = arith.constant 0 : index
    %c0_0 = arith.constant 0 : index
    %0 = vector.load %arg1[%c0, %c0_0] : memref<64x128xf32, #tpu.memory_space<vmem>>, vector<64x128xf32>
    %c0_1 = arith.constant 0 : index
    %c0_2 = arith.constant 0 : index
    %1 = vector.load %arg2[%c0_1, %c0_2] : memref<64x128xf32, #tpu.memory_space<vmem>>, vector<64x128xf32>
    %c0_3 = arith.constant 0 : index
    %c0_4 = arith.constant 0 : index
    %2 = vector.load %arg3[%c0_3, %c0_4] : memref<64x128xf32, #tpu.memory_space<vmem>>, vector<64x128xf32>
    %3 = arith.addf %1, %2 : vector<64x128xf32>
    %cst = arith.constant 5.000000e-01 : f32
    %4 = vector.broadcast %cst : f32 to vector<64x128xf32>
    %5 = arith.mulf %3, %4 : vector<64x128xf32>
    %6 = arith.mulf %0, %5 : vector<64x128xf32>
    %cst_5 = arith.constant dense<0.000000e+00> : vector<64xf32>
    %7 = vector.multi_reduction <add>, %6, %cst_5 [1] : vector<64x128xf32> to vector<64xf32>
    %8 = vector.shape_cast %7 : vector<64xf32> to vector<64x1xf32>
    %cst_6 = arith.constant dense<0.000000e+00> : vector<64xf32>
    %9 = vector.multi_reduction <add>, %0, %cst_6 [1] : vector<64x128xf32> to vector<64xf32>
    %10 = vector.shape_cast %9 : vector<64xf32> to vector<64x1xf32>
    %cst_7 = arith.constant 1.000000e-10 : f32
    %11 = vector.broadcast %cst_7 : f32 to vector<64x1xf32>
    %12 = arith.addf %10, %11 : vector<64x1xf32>
    %13 = arith.divf %8, %12 : vector<64x1xf32>
    %14 = tpu.transpose %13, [1, 0] : vector<64x1xf32> -> vector<1x64xf32>
    %15 = vector.shape_cast %14 : vector<1x64xf32> to vector<1x1x64xf32>
    %c0_8 = arith.constant 0 : index
    %c0_9 = arith.constant 0 : index
    %c0_10 = arith.constant 0 : index
    %16 = vector.load %arg4[%c0_8, %c0_9, %c0_10] : memref<1x1x64xf32, #tpu.memory_space<vmem>>, vector<1x1x64xf32>
    tpu.vector_store %arg4[%c0_8, %c0_9, %c0_10], %15 {strides = array<i32>} : memref<1x1x64xf32, #tpu.memory_space<vmem>>, vector<1x1x64xf32>,
    %cst_11 = arith.constant dense<0x7F800000> : vector<64xf32>
    %17 = vector.multi_reduction <minimumf>, %5, %cst_11 [1] : vector<64x128xf32> to vector<64xf32>
    %18 = vector.shape_cast %17 : vector<64xf32> to vector<64x1xf32>
    %cst_12 = arith.constant dense<0x7F800000> : vector<1xf32>
    %19 = vector.multi_reduction <minimumf>, %18, %cst_12 [0] : vector<64x1xf32> to vector<1xf32>
    %20 = vector.shape_cast %19 : vector<1xf32> to vector<1x1xf32>
    %cst_13 = arith.constant dense<0xFF800000> : vector<64xf32>
    %21 = vector.multi_reduction <maximumf>, %5, %cst_13 [1] : vector<64x128xf32> to vector<64xf32>
    %22 = vector.shape_cast %21 : vector<64xf32> to vector<64x1xf32>
    %cst_14 = arith.constant dense<0xFF800000> : vector<1xf32>
    %23 = vector.multi_reduction <maximumf>, %22, %cst_14 [0] : vector<64x1xf32> to vector<1xf32>
    %24 = vector.shape_cast %23 : vector<1xf32> to vector<1x1xf32>
    %25 = vector.shape_cast %20 : vector<1x1xf32> to vector<1x1x1xf32>
    %26 = vector.broadcast %25 : vector<1x1x1xf32> to vector<1x1x128xf32>
    %c0_15 = arith.constant 0 : index
    %c0_16 = arith.constant 0 : index
    %c0_17 = arith.constant 0 : index
    %27 = vector.load %arg5[%c0_15, %c0_16, %c0_17] : memref<1x1x128xf32, #tpu.memory_space<vmem>>, vector<1x1x128xf32>
    tpu.vector_store %arg5[%c0_15, %c0_16, %c0_17], %26 {strides = array<i32>} : memref<1x1x128xf32, #tpu.memory_space<vmem>>, vector<1x1x128xf32>,
    %28 = vector.shape_cast %24 : vector<1x1xf32> to vector<1x1x1xf32>
    %29 = vector.broadcast %28 : vector<1x1x1xf32> to vector<1x1x128xf32>
    %c0_18 = arith.constant 0 : index
    %c0_19 = arith.constant 0 : index
    %c0_20 = arith.constant 0 : index
    %30 = vector.load %arg6[%c0_18, %c0_19, %c0_20] : memref<1x1x128xf32, #tpu.memory_space<vmem>>, vector<1x1x128xf32>
    tpu.vector_store %arg6[%c0_18, %c0_19, %c0_20], %29 {strides = array<i32>} : memref<1x1x128xf32, #tpu.memory_space<vmem>>, vector<1x1x128xf32>,
    return
  }
  func.func @transform_0(%arg0: i32) -> (i32, i32) {
    %c0_i32 = arith.constant 0 : i32
    %c0_i32_0 = arith.constant 0 : i32
    return %arg0, %c0_i32 : i32, i32
  }
  func.func @transform_1(%arg0: i32) -> (i32, i32) {
    %c0_i32 = arith.constant 0 : i32
    %c0_i32_0 = arith.constant 0 : i32
    return %arg0, %c0_i32 : i32, i32
  }
  func.func @transform_2(%arg0: i32) -> (i32, i32) {
    %c0_i32 = arith.constant 0 : i32
    %c0_i32_0 = arith.constant 0 : i32
    return %arg0, %c0_i32 : i32, i32
  }
  func.func @transform_3(%arg0: i32) -> (i32, i32, i32) {
    %c0_i32 = arith.constant 0 : i32
    %c0_i32_0 = arith.constant 0 : i32
    %c0_i32_1 = arith.constant 0 : i32
    return %arg0, %c0_i32, %c0_i32_0 : i32, i32, i32
  }
  func.func @transform_4(%arg0: i32) -> (i32, i32, i32) {
    %c0_i32 = arith.constant 0 : i32
    %c0_i32_0 = arith.constant 0 : i32
    %c0_i32_1 = arith.constant 0 : i32
    return %arg0, %c0_i32, %c0_i32_0 : i32, i32, i32
  }
  func.func @transform_5(%arg0: i32) -> (i32, i32, i32) {
    %c0_i32 = arith.constant 0 : i32
    %c0_i32_0 = arith.constant 0 : i32
    %c0_i32_1 = arith.constant 0 : i32
    return %arg0, %c0_i32, %c0_i32_0 : i32, i32, i32
  }
}

</mosaic_0001>

<llo_original>
// kernel: tpu_custom_call.1
$region0: #{tpu_custom_call.1}
  #allocation0 [shape = 'u32[]', space=smem, size = 0x4, offset = 0x4, fixed_abs, tag = 'smem constant byte address 0x4 - core index']
  #allocation1 [shape = 'u32[144,128]{1,0:T(1,128)}', space=vmem, size = 0x12000, scoped, tag = 'internal scratch']
  %s0 = inlined_call_operand.hbm [shape: f32[64,128], index: 0, kind: input, shape index: {}]
  %s1 = inlined_call_operand.hbm [shape: f32[64,128], index: 1, kind: input, shape index: {}]
  %s2 = inlined_call_operand.hbm [shape: f32[64,128], index: 2, kind: input, shape index: {}]
  %s3 = inlined_call_operand.hbm [shape: f32[1,1,64], index: 3, kind: output, shape index: {0}]
  %s4 = inlined_call_operand.hbm [shape: f32[1,1,128], index: 4, kind: output, shape index: {1}]
  %s5 = inlined_call_operand.hbm [shape: f32[1,1,128], index: 5, kind: output, shape index: {2}]
  %6 = xla_tuple %s3, %s4, %s5
  %s7 = sld [smem:[#allocation0]]
  $region50: #{tpu_custom_call.1} parent=0
    _
  %s9 = ssub.s32 1, %s7
  %s10 = scalar_select 0, %s9, %s7
  $region1: #{tpu_custom_call.1} parent=0
    #allocation2 [shape = 'u8[32768]{0}', space=vmem, size = 0x8000, scoped, tag = 'input window, operand 0, single buffered']
    #allocation3 [shape = 's32[1]{0}', space=sflag, size = 0x4, scoped, tag = 'scoped memory for tpu_custom_call.1']
    #allocation4 [shape = 's32[1]{0}', space=sflag, size = 0x4, scoped, tag = 'scoped memory for tpu_custom_call.1']
    #allocation5 [shape = 'u8[32768]{0}', space=vmem, size = 0x8000, scoped, tag = 'input window, operand 1, single buffered']
    #allocation6 [shape = 's32[1]{0}', space=sflag, size = 0x4, scoped, tag = 'scoped memory for tpu_custom_call.1']
    #allocation7 [shape = 'u8[32768]{0}', space=vmem, size = 0x8000, scoped, tag = 'input window, operand 2, single buffered']
    #allocation8 [shape = 'u8[512]{0}', space=vmem, size = 0x400, scoped, tag = 'output window, operand 0, single buffered']
    #allocation9 [shape = 'u8[512]{0}', space=vmem, size = 0x400, scoped, tag = 'output window, operand 1, single buffered']
    #allocation10 [shape = 's32[1]{0}', space=sflag, size = 0x4, scoped, tag = 'scoped memory for tpu_custom_call.1']
    #allocation11 [shape = 'u8[512]{0}', space=vmem, size = 0x400, scoped, tag = 'output window, operand 2, single buffered']
    %11 = vsyncpa [#allocation3], 0
    %12 = vsyncpa [#allocation6], 0
    %13 = vsyncpa [#allocation4], 0
    %14 = vsyncpa [#allocation10], 0
    // Predicated region
    $region2: #{tpu_custom_call.1} parent=1 // pred_check
      _
    $region3: #{tpu_custom_call.1} parent=1 // pred_check_branch
      %16 = sbr.rel (0) target = $region5
    $region4: #{tpu_custom_call.1} parent=1 // pred_region
      %s18 = ssub.s32 1024, 1024
      %19 = vsyncadd [#allocation3], %s18
      %s20 = sshll.u32 [#allocation2], 4
      %s21 = int_to_ptr.vmem [resolvable:$true] %s20
      %26 = dma.hbm_to_vmem [thread:$0]  %s0, 1024, %s21, [#allocation3], 128, 128, 8
    $region5: #{tpu_custom_call.1} parent=1 // pred_fallthru
      _
    // Predicated region
    $region6: #{tpu_custom_call.1} parent=1 // pred_check
      _
    $region7: #{tpu_custom_call.1} parent=1 // pred_check_branch
      %28 = sbr.rel (0) target = $region9
    $region8: #{tpu_custom_call.1} parent=1 // pred_region
      %s30 = ssub.s32 1024, 1024
      %31 = vsyncadd [#allocation6], %s30
      %s32 = sshll.u32 [#allocation5], 4
      %s33 = int_to_ptr.vmem [resolvable:$true] %s32
      %38 = dma.hbm_to_vmem [thread:$0]  %s1, 1024, %s33, [#allocation6], 128, 128, 8
    $region9: #{tpu_custom_call.1} parent=1 // pred_fallthru
      _
    // Predicated region
    $region10: #{tpu_custom_call.1} parent=1 // pred_check
      _
    $region11: #{tpu_custom_call.1} parent=1 // pred_check_branch
      %40 = sbr.rel (0) target = $region13
    $region12: #{tpu_custom_call.1} parent=1 // pred_region
      %s42 = ssub.s32 1024, 1024
      %43 = vsyncadd [#allocation6], %s42
      %s44 = sshll.u32 [#allocation7], 4
      %s45 = int_to_ptr.vmem [resolvable:$true] %s44
      %50 = dma.hbm_to_vmem [thread:$0]  %s2, 1024, %s45, [#allocation6], 128, 128, 8
    $region13: #{tpu_custom_call.1} parent=1 // pred_fallthru
      _
    // Predicated region
    $region14: #{tpu_custom_call.1} parent=1 // pred_check
      _
    $region15: #{tpu_custom_call.1} parent=1 // pred_check_branch
      %52 = sbr.rel (0) target = $region17
    $region16: #{tpu_custom_call.1} parent=1 // pred_region
      %53 = dma.done [#allocation3], 1024
    $region17: #{tpu_custom_call.1} parent=1 // pred_fallthru
      _
    // Predicated region
    $region18: #{tpu_custom_call.1} parent=1 // pred_check
      _
    $region19: #{tpu_custom_call.1} parent=1 // pred_check_branch
      %55 = sbr.rel (0) target = $region21
    $region20: #{tpu_custom_call.1} parent=1 // pred_region
      %56 = dma.done [#allocation6], 1024
    $region21: #{tpu_custom_call.1} parent=1 // pred_fallthru
      _
    // Predicated region
    $region22: #{tpu_custom_call.1} parent=1 // pred_check
      _
    $region23: #{tpu_custom_call.1} parent=1 // pred_check_branch
      %58 = sbr.rel (0) target = $region25
    $region24: #{tpu_custom_call.1} parent=1 // pred_region
      %59 = dma.done [#allocation6], 1024
    $region25: #{tpu_custom_call.1} parent=1 // pred_fallthru
      _
    %v60 = vld [vmem:[#allocation2] sm:$0xff]
    %v61 = vld [vmem:[#allocation2 + $0x8] sm:$0xff]
    %v62 = vld [vmem:[#allocation2 + $0x10] sm:$0xff]
    %v63 = vld [vmem:[#allocation2 + $0x18] sm:$0xff]
    %v64 = vld [vmem:[#allocation2 + $0x20] sm:$0xff]
    %v65 = vld [vmem:[#allocation2 + $0x28] sm:$0xff]
    %v66 = vld [vmem:[#allocation2 + $0x30] sm:$0xff]
    %v67 = vld [vmem:[#allocation2 + $0x38] sm:$0xff]
    %v68 = vld [vmem:[#allocation5] sm:$0xff]
    %v69 = vld [vmem:[#allocation5 + $0x8] sm:$0xff]
    %v70 = vld [vmem:[#allocation5 + $0x10] sm:$0xff]
    %v71 = vld [vmem:[#allocation5 + $0x18] sm:$0xff]
    %v72 = vld [vmem:[#allocation5 + $0x20] sm:$0xff]
    %v73 = vld [vmem:[#allocation5 + $0x28] sm:$0xff]
    %v74 = vld [vmem:[#allocation5 + $0x30] sm:$0xff]
    %v75 = vld [vmem:[#allocation5 + $0x38] sm:$0xff]
    %v76 = vld [vmem:[#allocation7] sm:$0xff]
    %v77 = vld [vmem:[#allocation7 + $0x8] sm:$0xff]
    %v78 = vld [vmem:[#allocation7 + $0x10] sm:$0xff]
    %v79 = vld [vmem:[#allocation7 + $0x18] sm:$0xff]
    %v80 = vld [vmem:[#allocation7 + $0x20] sm:$0xff]
    %v81 = vld [vmem:[#allocation7 + $0x28] sm:$0xff]
    %v82 = vld [vmem:[#allocation7 + $0x30] sm:$0xff]
    %v83 = vld [vmem:[#allocation7 + $0x38] sm:$0xff]
    %v84 = vadd.f32 %v68, %v76
    %v85 = vadd.f32 %v69, %v77
    %v86 = vadd.f32 %v70, %v78
    %v87 = vadd.f32 %v71, %v79
    %v88 = vadd.f32 %v72, %v80
    %v89 = vadd.f32 %v73, %v81
    %v90 = vadd.f32 %v74, %v82
    %v91 = vadd.f32 %v75, %v83
    %v92 = vmul.f32 %v84, 0.5
    %v93 = vmul.f32 %v85, 0.5
    %v94 = vmul.f32 %v86, 0.5
    %v95 = vmul.f32 %v87, 0.5
    %v96 = vmul.f32 %v88, 0.5
    %v97 = vmul.f32 %v89, 0.5
    %v98 = vmul.f32 %v90, 0.5
    %v99 = vmul.f32 %v91, 0.5
    %v100 = vmul.f32 %v60, %v92
    %v101 = vmul.f32 %v61, %v93
    %v102 = vmul.f32 %v62, %v94
    %v103 = vmul.f32 %v63, %v95
    %v104 = vmul.f32 %v64, %v96
    %v105 = vmul.f32 %v65, %v97
    %v106 = vmul.f32 %v66, %v98
    %v107 = vmul.f32 %v67, %v99
    %108 = vadd.xlane.f32.xlu0 %v100
    %v109 = vpop.xlane.xlu0 %108
    %110 = vadd.xlane.f32.xlu0 %v101
    %v111 = vpop.xlane.xlu0 %110
    %112 = vadd.xlane.f32.xlu0 %v102
    %v113 = vpop.xlane.xlu0 %112
    %114 = vadd.xlane.f32.xlu0 %v103
    %v115 = vpop.xlane.xlu0 %114
    %116 = vadd.xlane.f32.xlu0 %v104
    %v117 = vpop.xlane.xlu0 %116
    %118 = vadd.xlane.f32.xlu0 %v105
    %v119 = vpop.xlane.xlu0 %118
    %120 = vadd.xlane.f32.xlu0 %v106
    %v121 = vpop.xlane.xlu0 %120
    %122 = vadd.xlane.f32.xlu0 %v107
    %v123 = vpop.xlane.xlu0 %122
    %124 = vadd.xlane.f32.xlu0 %v60
    %v125 = vpop.xlane.xlu0 %124
    %126 = vadd.xlane.f32.xlu0 %v61
    %v127 = vpop.xlane.xlu0 %126
    %128 = vadd.xlane.f32.xlu0 %v62
    %v129 = vpop.xlane.xlu0 %128
    %130 = vadd.xlane.f32.xlu0 %v63
    %v131 = vpop.xlane.xlu0 %130
    %132 = vadd.xlane.f32.xlu0 %v64
    %v133 = vpop.xlane.xlu0 %132
    %134 = vadd.xlane.f32.xlu0 %v65
    %v135 = vpop.xlane.xlu0 %134
    %136 = vadd.xlane.f32.xlu0 %v66
    %v137 = vpop.xlane.xlu0 %136
    %138 = vadd.xlane.f32.xlu0 %v67
    %v139 = vpop.xlane.xlu0 %138
    %v140 = vadd.f32 %v125, 1e-10
    %v141 = vadd.f32 %v127, 1e-10
    %v142 = vadd.f32 %v129, 1e-10
    %v143 = vadd.f32 %v131, 1e-10
    %v144 = vadd.f32 %v133, 1e-10
    %v145 = vadd.f32 %v135, 1e-10
    %v146 = vadd.f32 %v137, 1e-10
    %v147 = vadd.f32 %v139, 1e-10
    %v148 = vrcp.pop %v140
    %v149 = vmul.f32 %v109, %v148
    %v150 = vrcp.pop %v141
    %v151 = vmul.f32 %v111, %v150
    %v152 = vrcp.pop %v142
    %v153 = vmul.f32 %v113, %v152
    %v154 = vrcp.pop %v143
    %v155 = vmul.f32 %v115, %v154
    %v156 = vrcp.pop %v144
    %v157 = vmul.f32 %v117, %v156
    %v158 = vrcp.pop %v145
    %v159 = vmul.f32 %v119, %v158
    %v160 = vrcp.pop %v146
    %v161 = vmul.f32 %v121, %v160
    %v162 = vrcp.pop %v147
    %v163 = vmul.f32 %v123, %v162
    %164 = vxpose.xlu0.b32.start [1/16] %v149, 128
    %165 = vxpose.xlu0.b32.cont [2/16] %v151, 128
    %166 = vxpose.xlu0.b32.cont [3/16] %v153, 128
    %167 = vxpose.xlu0.b32.cont [4/16] %v155, 128
    %168 = vxpose.xlu0.b32.cont [5/16] %v157, 128
    %169 = vxpose.xlu0.b32.cont [6/16] %v159, 128
    %170 = vxpose.xlu0.b32.cont [7/16] %v161, 128
    %171 = vxpose.xlu0.b32.cont [8/16] %v163, 128
    %172 = vxpose.xlu0.b32.cont [9/16] 0.0, 128
    %173 = vxpose.xlu0.b32.cont [10/16] 0.0, 128
    %174 = vxpose.xlu0.b32.cont [11/16] 0.0, 128
    %175 = vxpose.xlu0.b32.cont [12/16] 0.0, 128
    %176 = vxpose.xlu0.b32.cont [13/16] 0.0, 128
    %177 = vxpose.xlu0.b32.cont [14/16] 0.0, 128
    %178 = vxpose.xlu0.b32.cont [15/16] 0.0, 128
    %179 = vxpose.xlu0.b32.end [16/16] 0.0, 128
    %v180 = vpop.trf.xlu0
    %v181 = vpop.trf.xlu0
    %v182 = vpop.trf.xlu0
    %v183 = vpop.trf.xlu0
    %v184 = vpop.trf.xlu0
    %v185 = vpop.trf.xlu0
    %v186 = vpop.trf.xlu0
    %v187 = vpop.trf.xlu0
    %v188 = vpop.trf.xlu0
    %v189 = vpop.trf.xlu0
    %v190 = vpop.trf.xlu0
    %v191 = vpop.trf.xlu0
    %v192 = vpop.trf.xlu0
    %v193 = vpop.trf.xlu0
    %v194 = vpop.trf.xlu0
    %v195 = vpop.trf.xlu0
    %vm196 = vcmask 516096
    %197 = vst.msk [vmem:[#allocation8] sm:$0x1] %vm196, %v180
    %198 = vmin.xlane.f32.xlu0 %v92
    %v199 = vpop.xlane.xlu0 %198
    %200 = vmin.xlane.f32.xlu0 %v93
    %v201 = vpop.xlane.xlu0 %200
    %202 = vmin.xlane.f32.xlu0 %v94
    %v203 = vpop.xlane.xlu0 %202
    %204 = vmin.xlane.f32.xlu0 %v95
    %v205 = vpop.xlane.xlu0 %204
    %206 = vmin.xlane.f32.xlu0 %v96
    %v207 = vpop.xlane.xlu0 %206
    %208 = vmin.xlane.f32.xlu0 %v97
    %v209 = vpop.xlane.xlu0 %208
    %210 = vmin.xlane.f32.xlu0 %v98
    %v211 = vpop.xlane.xlu0 %210
    %212 = vmin.xlane.f32.xlu0 %v99
    %v213 = vpop.xlane.xlu0 %212
    %v214 = vmin.f32 %v199, %v207
    %v215 = vmin.f32 %v201, %v209
    %v216 = vmin.f32 %v203, %v211
    %v217 = vmin.f32 %v205, %v213
    %v218 = vmin.f32 %v214, %v215
    %v219 = vmin.f32 %v216, %v217
    %v220 = vmin.f32 %v218, %v219
    %v221 = vrot.slane %v220, 4
    %v222 = vmin.f32 %v220, %v221
    %v223 = vrot.slane %v222, 2
    %v224 = vmin.f32 %v222, %v223
    %v225 = vrot.slane %v224, 1
    %v226 = vmin.f32 %v224, %v225
    %227 = vmax.xlane.f32.xlu0 %v92
    %v228 = vpop.xlane.xlu0 %227
    %229 = vmax.xlane.f32.xlu0 %v93
    %v230 = vpop.xlane.xlu0 %229
    %231 = vmax.xlane.f32.xlu0 %v94
    %v232 = vpop.xlane.xlu0 %231
    %233 = vmax.xlane.f32.xlu0 %v95
    %v234 = vpop.xlane.xlu0 %233
    %235 = vmax.xlane.f32.xlu0 %v96
    %v236 = vpop.xlane.xlu0 %235
    %237 = vmax.xlane.f32.xlu0 %v97
    %v238 = vpop.xlane.xlu0 %237
    %239 = vmax.xlane.f32.xlu0 %v98
    %v240 = vpop.xlane.xlu0 %239
    %241 = vmax.xlane.f32.xlu0 %v99
    %v242 = vpop.xlane.xlu0 %241
    %v243 = vmax.f32 %v228, %v236
    %v244 = vmax.f32 %v230, %v238
    %v245 = vmax.f32 %v232, %v240
    %v246 = vmax.f32 %v234, %v242
    %v247 = vmax.f32 %v243, %v244
    %v248 = vmax.f32 %v245, %v246
    %v249 = vmax.f32 %v247, %v248
    %v250 = vrot.slane %v249, 4
    %v251 = vmax.f32 %v249, %v250
    %v252 = vrot.slane %v251, 2
    %v253 = vmax.f32 %v251, %v252
    %v254 = vrot.slane %v253, 1
    %v255 = vmax.f32 %v253, %v254
    %256 = vst [vmem:[#allocation9] sm:$0x1] %v226
    %257 = vst [vmem:[#allocation11] sm:$0x1] %v255
    // Predicated region
    $region26: #{tpu_custom_call.1} parent=1 // pred_check
      _
    $region27: #{tpu_custom_call.1} parent=1 // pred_check_branch
      %259 = sbr.rel (0) target = $region29
    $region28: #{tpu_custom_call.1} parent=1 // pred_region
      %s261 = ssub.s32 16, 16
      %262 = vsyncadd [#allocation4], %s261
      %s264 = sshll.u32 [#allocation8], 4
      %s265 = int_to_ptr.vmem [resolvable:$true] %s264
      %267 = dma.vmem_to_hbm [thread:$0]  %s265, 16, %s3, [#allocation4]
    $region29: #{tpu_custom_call.1} parent=1 // pred_fallthru
      _
    // Predicated region
    $region30: #{tpu_custom_call.1} parent=1 // pred_check
      _
    $region31: #{tpu_custom_call.1} parent=1 // pred_check_branch
      %269 = sbr.rel (0) target = $region33
    $region32: #{tpu_custom_call.1} parent=1 // pred_region
      %s271 = ssub.s32 16, 16
      %272 = vsyncadd [#allocation10], %s271
      %s274 = sshll.u32 [#allocation9], 4
      %s275 = int_to_ptr.vmem [resolvable:$true] %s274
      %277 = dma.vmem_to_hbm [thread:$0]  %s275, 16, %s4, [#allocation10]
    $region33: #{tpu_custom_call.1} parent=1 // pred_fallthru
      _
    // Predicated region
    $region34: #{tpu_custom_call.1} parent=1 // pred_check
      _
    $region35: #{tpu_custom_call.1} parent=1 // pred_check_branch
      %279 = sbr.rel (0) target = $region37
    $region36: #{tpu_custom_call.1} parent=1 // pred_region
      %s281 = ssub.s32 16, 16
      %282 = vsyncadd [#allocation10], %s281
      %s284 = sshll.u32 [#allocation11], 4
      %s285 = int_to_ptr.vmem [resolvable:$true] %s284
      %287 = dma.vmem_to_hbm [thread:$0]  %s285, 16, %s5, [#allocation10]
    $region37: #{tpu_custom_call.1} parent=1 // pred_fallthru
      _
    // Predicated region
    $region38: #{tpu_custom_call.1} parent=1 // pred_check
      _
    $region39: #{tpu_custom_call.1} parent=1 // pred_check_branch
      %289 = sbr.rel (0) target = $region41
    $region40: #{tpu_custom_call.1} parent=1 // pred_region
      %290 = dma.done [#allocation4], 16
    $region41: #{tpu_custom_call.1} parent=1 // pred_fallthru
      _
    // Predicated region
    $region42: #{tpu_custom_call.1} parent=1 // pred_check
      _
    $region43: #{tpu_custom_call.1} parent=1 // pred_check_branch
      %292 = sbr.rel (0) target = $region45
    $region44: #{tpu_custom_call.1} parent=1 // pred_region
      %293 = dma.done [#allocation10], 16
    $region45: #{tpu_custom_call.1} parent=1 // pred_fallthru
      _
    // Predicated region
    $region46: #{tpu_custom_call.1} parent=1 // pred_check
      _
    $region47: #{tpu_custom_call.1} parent=1 // pred_check_branch
      %295 = sbr.rel (0) target = $region49
    $region48: #{tpu_custom_call.1} parent=1 // pred_region
      %296 = dma.done [#allocation10], 16
    $region49: #{tpu_custom_call.1} parent=1 // pred_fallthru
      _
    %297 = vsyncpa [#allocation3], 1
    %298 = vsyncpa [#allocation6], 1
    %299 = vsyncpa [#allocation4], 1
    %300 = vsyncpa [#allocation10], 1

</llo_original>
